<compile_context>
chip_gen: v7x
topology: tpu7x:2x2x1
jax: 0.10.0
libtpu: 0.0.40
codegen_flags: <defaults>
</compile_context>

<pallas_src>
import functools

import jax
import jax.numpy as jnp
from jax.experimental import pallas as pl
from jax.experimental.pallas import tpu as pltpu

_GOLDEN = 0x9E3779B9
_M1 = 0x7FEB352D
_M2 = 0x846CA68B


def _hash_u32(x):
    # "lowbias32" integer finalizer -- decorrelates sequential counters.
    x = x ^ (x >> 16)
    x = x * jnp.uint32(_M1)
    x = x ^ (x >> 15)
    x = x * jnp.uint32(_M2)
    x = x ^ (x >> 16)
    return x


def _std_normal_from_u32(bits):
    # uniform in (0,1): top 23 bits, +0.5 ulp so endpoints are never hit.
    u = ((bits >> 9).astype(jnp.int32).astype(jnp.float32) + 0.5) * (1.0 / (1 << 23))
    t = 2.0 * u - 1.0
    # erfinv polynomial (Giles 2010): z = sqrt(2) * erfinv(2u-1).
    w = -jnp.log((1.0 - t) * (1.0 + t))
    ws = w - 2.5
    p = jnp.float32(2.81022636e-08)
    for c in (3.43273939e-07, -3.5233877e-06, -4.39150654e-06, 0.00021858087,
              -0.00125372503, -0.00417768164, 0.246640727, 1.50140941):
        p = p * ws + jnp.float32(c)
    wb = jnp.sqrt(w) - 3.0
    q = jnp.float32(-0.000200214257)
    for c in (0.000100950558, 0.00134934322, -0.00367342844, 0.00573950773,
              -0.0076224613, 0.00943887047, 1.00167406, 2.83297682):
        q = q * wb + jnp.float32(c)
    erfinv_t = jnp.where(w < 5.0, p, q) * t
    return jnp.float32(1.4142135623730951) * erfinv_t


def _noise_kernel(seed_ref, coeff_ref, x_ref, o_ref, *, tile_r, lane_w):
    i = pl.program_id(0)
    x = x_ref[...]

    # Per-tile scalar part of the counter (stays on the scalar unit / sregs).
    seed_mix = seed_ref[0].astype(jnp.uint32) * jnp.uint32(_GOLDEN)
    tile_base = (i * (tile_r * lane_w)).astype(jnp.uint32) + seed_mix

    # Global element index -> counter-based PRNG (unique noise per element,
    # independent of tiling).
    row = jax.lax.broadcasted_iota(jnp.int32, (tile_r, lane_w), 0)
    col = jax.lax.broadcasted_iota(jnp.int32, (tile_r, lane_w), 1)
    ctr = (row * lane_w + col).astype(jnp.uint32) + tile_base
    bits = _hash_u32(ctr)
    z = _std_normal_from_u32(bits)  # ~N(0,1), f32

    # y = x + z * (scale * std); the add stays in the input dtype.
    coeff = coeff_ref[0]  # f32 scalar from SMEM, splat by the VPU
    o_ref[...] = x + (z * coeff).astype(x.dtype)


def _choose_layout(n_total):
    """Pick a lane-dense 2-D slab (rows, lane_w). Returns (lane_w, rows, pad)."""
    for lw in (2048, 1024, 512, 256, 128):
        if n_total % lw == 0 and n_total // lw >= 8:
            return lw, n_total // lw, 0
    for lw in (2048, 1024, 512, 256, 128):
        if n_total % lw == 0:
            return lw, n_total // lw, 0
    lw = 512
    rows = -(-n_total // lw)
    return lw, rows, rows * lw - n_total


def _choose_tile_rows(rows, lane_w, dtype_bytes):
    """~1 MiB per input block: near-roofline pipelining, 2x(in+out) buffers
    stay well under the default scoped-VMEM limit on v5e/v6e/v7x."""
    target_bytes = 1 << 20
    tile_r = max(8, (target_bytes // (lane_w * dtype_bytes)) // 8 * 8)
    return rows if tile_r >= rows else tile_r


def noise_forward(x, *, scale, seed, training=True):
    """Pallas equivalent of Noise.forward. Accepts any shape (e.g. NCHW)."""
    if not training or scale is None:
        return x
    if x.size == 0:
        return x

    orig_shape = x.shape
    n_total = x.size

    # Global unbiased std (torch.Tensor.std default); convert+reduce fuse in XLA.
    std = jnp.std(x.astype(jnp.float32), ddof=1)
    coeff = (jnp.float32(scale) * std).astype(jnp.float32).reshape(1)
    seed_arr = jnp.asarray(seed, dtype=jnp.int32).reshape(1)

    lane_w, rows, pad = _choose_layout(n_total)
    flat = x.reshape(-1)
    if pad:
        flat = jnp.pad(flat, (0, pad))
    x2 = flat.reshape(rows, lane_w)

    tile_r = _choose_tile_rows(rows, lane_w, x.dtype.itemsize)
    grid = (pl.cdiv(rows, tile_r),)

    kernel = functools.partial(_noise_kernel, tile_r=tile_r, lane_w=lane_w)

    # TODO(synk): optionally alias x2 with the output (input_output_aliases)
    # when this sits inside a jitted training step and x is not reused.
    out2 = pl.pallas_call(
        kernel,
        out_shape=jax.ShapeDtypeStruct((rows, lane_w), x.dtype),
        grid=grid,
        in_specs=[
            pl.BlockSpec(memory_space=pltpu.MemorySpace.SMEM),  # seed (1,) i32
            pl.BlockSpec(memory_space=pltpu.MemorySpace.SMEM),  # scale*std (1,) f32
            pl.BlockSpec((tile_r, lane_w), lambda i: (i, 0)),   # x tile
        ],
        out_specs=pl.BlockSpec((tile_r, lane_w), lambda i: (i, 0)),
        compiler_params=pltpu.CompilerParams(
            dimension_semantics=("parallel",),  # shard tiles across TCs on v7x
        ),
    )(seed_arr, coeff, x2)

    out = out2.reshape(-1)
    if pad:
        out = out[:n_total]
    return out.reshape(orig_shape)


if __name__ == "__main__":
    key = jax.random.PRNGKey(0)
    x = jax.random.normal(key, (2, 4, 16, 16), dtype=jnp.float32)  # NCHW
    scale = 0.1

    y = noise_forward(x, scale=scale, seed=42, training=True)
    y = jax.block_until_ready(y)

    # Sanity checks: shape/dtype preserved, finite, noise ~ N(0, (scale*std)^2).
    assert y.shape == x.shape and y.dtype == x.dtype
    assert bool(jnp.all(jnp.isfinite(y)))
    x_std = float(jnp.std(x, ddof=1))
    diff = (y - x) / (scale * x_std)           # should be ~N(0,1)
    assert float(jnp.max(jnp.abs(diff))) < 6.0
    assert abs(float(jnp.mean(diff))) < 0.3
    assert 0.8 < float(jnp.std(diff)) < 1.2

    # Eval mode / scale=None path is the identity, as in the PyTorch module.
    y_eval = noise_forward(x, scale=scale, seed=42, training=False)
    assert bool(jnp.all(y_eval == x))
    y_none = noise_forward(x, scale=None, seed=42, training=True)
    assert bool(jnp.all(y_none == x))

    print("KERNEL_OK")
</pallas_src>

<mosaic_0001>
module attributes {stable_mosaic.version = 11 : i64} {
  func.func @_noise_kernel(%arg0: i32, %arg1: memref<1xi32, #tpu.memory_space<smem>>, %arg2: memref<1xf32, #tpu.memory_space<smem>>, %arg3: memref<8x256xf32, #tpu.memory_space<vmem>>, %arg4: memref<8x256xf32, #tpu.memory_space<vmem>>) attributes {dimension_semantics = [#tpu.dimension_semantics<parallel>], iteration_bounds = array<i64: 1>, scalar_prefetch = 0 : i64, scratch_operands = 0 : i64, tpu.core_type = #tpu.core_type<tc>, window_params = [{transform_indices = @transform_0, window_bounds = array<i64: 1>}, {transform_indices = @transform_1, window_bounds = array<i64: 1>}, {transform_indices = @transform_2, window_bounds = array<i64: 8, 256>}, {transform_indices = @transform_3, window_bounds = array<i64: 8, 256>}]} {
    %c0 = arith.constant 0 : index
    %c0_0 = arith.constant 0 : index
    %0 = vector.load %arg3[%c0, %c0_0] : memref<8x256xf32, #tpu.memory_space<vmem>>, vector<8x256xf32>
    %c0_1 = arith.constant 0 : index
    %1 = memref.load %arg1[%c0_1] : memref<1xi32, #tpu.memory_space<smem>>
    %c-1640531527_i32 = arith.constant -1640531527 : i32
    %2 = arith.muli %1, %c-1640531527_i32 : i32
    %c2048_i32 = arith.constant 2048 : i32
    %3 = arith.muli %arg0, %c2048_i32 : i32
    %4 = arith.addi %3, %2 : i32
    %5 = tpu.iota {dimensions = array<i32: 0>} : vector<8x256xi32>
    %6 = tpu.iota {dimensions = array<i32: 1>} : vector<8x256xi32>
    %c256_i32 = arith.constant 256 : i32
    %7 = vector.broadcast %c256_i32 : i32 to vector<8x256xi32>
    %8 = arith.muli %5, %7 : vector<8x256xi32>
    %9 = arith.addi %8, %6 : vector<8x256xi32>
    %10 = vector.broadcast %4 : i32 to vector<8x256xi32>
    %11 = arith.addi %9, %10 : vector<8x256xi32>
    %c16_i32 = arith.constant 16 : i32
    %12 = vector.broadcast %c16_i32 : i32 to vector<8x256xi32>
    %13 = arith.shrui %11, %12 : vector<8x256xi32>
    %14 = arith.xori %11, %13 : vector<8x256xi32>
    %c2146121005_i32 = arith.constant 2146121005 : i32
    %15 = vector.broadcast %c2146121005_i32 : i32 to vector<8x256xi32>
    %16 = arith.muli %14, %15 : vector<8x256xi32>
    %c15_i32 = arith.constant 15 : i32
    %17 = vector.broadcast %c15_i32 : i32 to vector<8x256xi32>
    %18 = arith.shrui %16, %17 : vector<8x256xi32>
    %19 = arith.xori %16, %18 : vector<8x256xi32>
    %c-2073254261_i32 = arith.constant -2073254261 : i32
    %20 = vector.broadcast %c-2073254261_i32 : i32 to vector<8x256xi32>
    %21 = arith.muli %19, %20 : vector<8x256xi32>
    %c16_i32_2 = arith.constant 16 : i32
    %22 = vector.broadcast %c16_i32_2 : i32 to vector<8x256xi32>
    %23 = arith.shrui %21, %22 : vector<8x256xi32>
    %24 = arith.xori %21, %23 : vector<8x256xi32>
    %c9_i32 = arith.constant 9 : i32
    %25 = vector.broadcast %c9_i32 : i32 to vector<8x256xi32>
    %26 = arith.shrui %24, %25 : vector<8x256xi32>
    %27 = arith.sitofp %26 : vector<8x256xi32> to vector<8x256xf32>
    %cst = arith.constant 5.000000e-01 : f32
    %28 = vector.broadcast %cst : f32 to vector<8x256xf32>
    %29 = arith.addf %27, %28 : vector<8x256xf32>
    %cst_3 = arith.constant 1.1920929E-7 : f32
    %30 = vector.broadcast %cst_3 : f32 to vector<8x256xf32>
    %31 = arith.mulf %29, %30 : vector<8x256xf32>
    %cst_4 = arith.constant 2.000000e+00 : f32
    %32 = vector.broadcast %cst_4 : f32 to vector<8x256xf32>
    %33 = arith.mulf %32, %31 : vector<8x256xf32>
    %cst_5 = arith.constant 1.000000e+00 : f32
    %34 = vector.broadcast %cst_5 : f32 to vector<8x256xf32>
    %35 = arith.subf %33, %34 : vector<8x256xf32>
    %cst_6 = arith.constant 1.000000e+00 : f32
    %36 = vector.broadcast %cst_6 : f32 to vector<8x256xf32>
    %37 = arith.subf %36, %35 : vector<8x256xf32>
    %cst_7 = arith.constant 1.000000e+00 : f32
    %38 = vector.broadcast %cst_7 : f32 to vector<8x256xf32>
    %39 = arith.addf %38, %35 : vector<8x256xf32>
    %40 = arith.mulf %37, %39 : vector<8x256xf32>
    %41 = math.log %40 : vector<8x256xf32>
    %cst_8 = arith.constant 0.000000e+00 : f32
    %42 = vector.broadcast %cst_8 : f32 to vector<8x256xf32>
    %43 = arith.subf %42, %41 : vector<8x256xf32>
    %cst_9 = arith.constant 2.500000e+00 : f32
    %44 = vector.broadcast %cst_9 : f32 to vector<8x256xf32>
    %45 = arith.subf %43, %44 : vector<8x256xf32>
    %cst_10 = arith.constant 2.81022636E-8 : f32
    %46 = vector.broadcast %cst_10 : f32 to vector<8x256xf32>
    %47 = arith.mulf %46, %45 : vector<8x256xf32>
    %cst_11 = arith.constant 3.43273939E-7 : f32
    %48 = vector.broadcast %cst_11 : f32 to vector<8x256xf32>
    %49 = arith.addf %47, %48 : vector<8x256xf32>
    %50 = arith.mulf %49, %45 : vector<8x256xf32>
    %cst_12 = arith.constant -3.5233877E-6 : f32
    %51 = vector.broadcast %cst_12 : f32 to vector<8x256xf32>
    %52 = arith.addf %50, %51 : vector<8x256xf32>
    %53 = arith.mulf %52, %45 : vector<8x256xf32>
    %cst_13 = arith.constant -4.39150654E-6 : f32
    %54 = vector.broadcast %cst_13 : f32 to vector<8x256xf32>
    %55 = arith.addf %53, %54 : vector<8x256xf32>
    %56 = arith.mulf %55, %45 : vector<8x256xf32>
    %cst_14 = arith.constant 2.1858087E-4 : f32
    %57 = vector.broadcast %cst_14 : f32 to vector<8x256xf32>
    %58 = arith.addf %56, %57 : vector<8x256xf32>
    %59 = arith.mulf %58, %45 : vector<8x256xf32>
    %cst_15 = arith.constant -0.00125372503 : f32
    %60 = vector.broadcast %cst_15 : f32 to vector<8x256xf32>
    %61 = arith.addf %59, %60 : vector<8x256xf32>
    %62 = arith.mulf %61, %45 : vector<8x256xf32>
    %cst_16 = arith.constant -0.00417768164 : f32
    %63 = vector.broadcast %cst_16 : f32 to vector<8x256xf32>
    %64 = arith.addf %62, %63 : vector<8x256xf32>
    %65 = arith.mulf %64, %45 : vector<8x256xf32>
    %cst_17 = arith.constant 0.246640727 : f32
    %66 = vector.broadcast %cst_17 : f32 to vector<8x256xf32>
    %67 = arith.addf %65, %66 : vector<8x256xf32>
    %68 = arith.mulf %67, %45 : vector<8x256xf32>
    %cst_18 = arith.constant 1.50140941 : f32
    %69 = vector.broadcast %cst_18 : f32 to vector<8x256xf32>
    %70 = arith.addf %68, %69 : vector<8x256xf32>
    %71 = math.sqrt %43 : vector<8x256xf32>
    %cst_19 = arith.constant 3.000000e+00 : f32
    %72 = vector.broadcast %cst_19 : f32 to vector<8x256xf32>
    %73 = arith.subf %71, %72 : vector<8x256xf32>
    %cst_20 = arith.constant -2.00214257E-4 : f32
    %74 = vector.broadcast %cst_20 : f32 to vector<8x256xf32>
    %75 = arith.mulf %74, %73 : vector<8x256xf32>
    %cst_21 = arith.constant 1.00950558E-4 : f32
    %76 = vector.broadcast %cst_21 : f32 to vector<8x256xf32>
    %77 = arith.addf %75, %76 : vector<8x256xf32>
    %78 = arith.mulf %77, %73 : vector<8x256xf32>
    %cst_22 = arith.constant 0.00134934322 : f32
    %79 = vector.broadcast %cst_22 : f32 to vector<8x256xf32>
    %80 = arith.addf %78, %79 : vector<8x256xf32>
    %81 = arith.mulf %80, %73 : vector<8x256xf32>
    %cst_23 = arith.constant -0.00367342844 : f32
    %82 = vector.broadcast %cst_23 : f32 to vector<8x256xf32>
    %83 = arith.addf %81, %82 : vector<8x256xf32>
    %84 = arith.mulf %83, %73 : vector<8x256xf32>
    %cst_24 = arith.constant 0.00573950773 : f32
    %85 = vector.broadcast %cst_24 : f32 to vector<8x256xf32>
    %86 = arith.addf %84, %85 : vector<8x256xf32>
    %87 = arith.mulf %86, %73 : vector<8x256xf32>
    %cst_25 = arith.constant -0.0076224613 : f32
    %88 = vector.broadcast %cst_25 : f32 to vector<8x256xf32>
    %89 = arith.addf %87, %88 : vector<8x256xf32>
    %90 = arith.mulf %89, %73 : vector<8x256xf32>
    %cst_26 = arith.constant 0.00943887047 : f32
    %91 = vector.broadcast %cst_26 : f32 to vector<8x256xf32>
    %92 = arith.addf %90, %91 : vector<8x256xf32>
    %93 = arith.mulf %92, %73 : vector<8x256xf32>
    %cst_27 = arith.constant 1.00167406 : f32
    %94 = vector.broadcast %cst_27 : f32 to vector<8x256xf32>
    %95 = arith.addf %93, %94 : vector<8x256xf32>
    %96 = arith.mulf %95, %73 : vector<8x256xf32>
    %cst_28 = arith.constant 2.83297682 : f32
    %97 = vector.broadcast %cst_28 : f32 to vector<8x256xf32>
    %98 = arith.addf %96, %97 : vector<8x256xf32>
    %cst_29 = arith.constant 5.000000e+00 : f32
    %99 = vector.broadcast %cst_29 : f32 to vector<8x256xf32>
    %100 = arith.cmpf olt, %43, %99 : vector<8x256xf32>
    %101 = arith.select %100, %70, %98 : vector<8x256xi1>, vector<8x256xf32>
    %102 = arith.mulf %101, %35 : vector<8x256xf32>
    %cst_30 = arith.constant 1.41421354 : f32
    %103 = vector.broadcast %cst_30 : f32 to vector<8x256xf32>
    %104 = arith.mulf %103, %102 : vector<8x256xf32>
    %c0_31 = arith.constant 0 : index
    %105 = memref.load %arg2[%c0_31] : memref<1xf32, #tpu.memory_space<smem>>
    %106 = vector.broadcast %105 : f32 to vector<8x256xf32>
    %107 = arith.mulf %104, %106 : vector<8x256xf32>
    %108 = arith.addf %0, %107 : vector<8x256xf32>
    %c0_32 = arith.constant 0 : index
    %c0_33 = arith.constant 0 : index
    %109 = vector.load %arg4[%c0_32, %c0_33] : memref<8x256xf32, #tpu.memory_space<vmem>>, vector<8x256xf32>
    tpu.vector_store %arg4[%c0_32, %c0_33], %108 {strides = array<i32>} : memref<8x256xf32, #tpu.memory_space<vmem>>, vector<8x256xf32>,
    return
  }
  func.func @transform_0(%arg0: i32) -> i32 {
    %c0_i32 = arith.constant 0 : i32
    %c0_i32_0 = arith.constant 0 : i32
    return %c0_i32 : i32
  }
  func.func @transform_1(%arg0: i32) -> i32 {
    %c0_i32 = arith.constant 0 : i32
    %c0_i32_0 = arith.constant 0 : i32
    return %c0_i32 : i32
  }
  func.func @transform_2(%arg0: i32) -> (i32, i32) {
    %c0_i32 = arith.constant 0 : i32
    %c0_i32_0 = arith.constant 0 : i32
    return %arg0, %c0_i32 : i32, i32
  }
  func.func @transform_3(%arg0: i32) -> (i32, i32) {
    %c0_i32 = arith.constant 0 : i32
    %c0_i32_0 = arith.constant 0 : i32
    return %arg0, %c0_i32 : i32, i32
  }
}

</mosaic_0001>

<llo_original>
// kernel: tpu_custom_call.1
$region0: #{tpu_custom_call.1}
  #allocation0 [shape = 'u32[]', space=smem, size = 0x4, offset = 0x4, fixed_abs, tag = 'smem constant byte address 0x4 - core index']
  #allocation1 [shape = 'u32[144,128]{1,0:T(1,128)}', space=vmem, size = 0x12000, scoped, tag = 'internal scratch']
  #allocation2 [shape = 's32[1]{0:T(128)S(6)}', space=smem, size = 0x200, scoped, tag = 'scoped memory for tpu_custom_call.1']
  #allocation3 [shape = 'f32[1]{0:T(128)S(6)}', space=smem, size = 0x200, scoped, tag = 'scoped memory for tpu_custom_call.1']
  %s0 = inlined_call_operand.<no memory space> [shape: s32[1], index: 0, kind: input, shape index: {}]
  %s1 = inlined_call_operand.<no memory space> [shape: f32[1], index: 1, kind: input, shape index: {}]
  %s2 = inlined_call_operand.hbm [shape: f32[8,256], index: 2, kind: input, shape index: {}]
  %s3 = inlined_call_operand.hbm [shape: f32[8,256], index: 3, kind: output, shape index: {}]
  %s4 = sld [smem:[#allocation0]]
  $region26: #{tpu_custom_call.1} parent=0
    _
  %s6 = ssub.s32 1, %s4
  %s7 = scalar_select 0, %s6, %s4
  %8 = sst [smem:[#allocation2]] %s0
  %9 = sst [smem:[#allocation3]] %s1
  $region1: #{tpu_custom_call.1} parent=0
    #allocation4 [shape = 'u8[8192]{0}', space=vmem, size = 0x2000, scoped, tag = 'input window, operand 2, single buffered']
    #allocation5 [shape = 's32[1]{0}', space=sflag, size = 0x4, scoped, tag = 'scoped memory for tpu_custom_call.1']
    #allocation6 [shape = 's32[1]{0}', space=sflag, size = 0x4, scoped, tag = 'scoped memory for tpu_custom_call.1']
    #allocation7 [shape = 'u8[8192]{0}', space=vmem, size = 0x2000, scoped, tag = 'output window, operand 0, single buffered']
    %10 = vsyncpa [#allocation5], 0
    %11 = vsyncpa [#allocation6], 0
    // Predicated region
    $region2: #{tpu_custom_call.1} parent=1 // pred_check
      _
    $region3: #{tpu_custom_call.1} parent=1 // pred_check_branch
      %13 = sbr.rel (0) target = $region5
    $region4: #{tpu_custom_call.1} parent=1 // pred_region
      _
    $region5: #{tpu_custom_call.1} parent=1 // pred_fallthru
      _
    // Predicated region
    $region6: #{tpu_custom_call.1} parent=1 // pred_check
      _
    $region7: #{tpu_custom_call.1} parent=1 // pred_check_branch
      %15 = sbr.rel (0) target = $region9
    $region8: #{tpu_custom_call.1} parent=1 // pred_region
      _
    $region9: #{tpu_custom_call.1} parent=1 // pred_fallthru
      _
    // Predicated region
    $region10: #{tpu_custom_call.1} parent=1 // pred_check
      _
    $region11: #{tpu_custom_call.1} parent=1 // pred_check_branch
      %17 = sbr.rel (0) target = $region13
    $region12: #{tpu_custom_call.1} parent=1 // pred_region
      %s19 = ssub.s32 256, 256
      %20 = vsyncadd [#allocation5], %s19
      %s22 = sshll.u32 [#allocation4], 4
      %s23 = int_to_ptr.vmem [resolvable:$true] %s22
      %25 = dma.hbm_to_vmem [thread:$0]  %s2, 256, %s23, [#allocation5]
    $region13: #{tpu_custom_call.1} parent=1 // pred_fallthru
      _
    // Predicated region
    $region14: #{tpu_custom_call.1} parent=1 // pred_check
      _
    $region15: #{tpu_custom_call.1} parent=1 // pred_check_branch
      %27 = sbr.rel (0) target = $region17
    $region16: #{tpu_custom_call.1} parent=1 // pred_region
      %28 = dma.done [#allocation5], 256
    $region17: #{tpu_custom_call.1} parent=1 // pred_fallthru
      _
    %v29 = vld [vmem:[#allocation4] sm:$0xff]
    %v30 = vld [vmem:[#allocation4 + $0x8] sm:$0xff]
    %s31 = sld [smem:[#allocation2]]
    %s32 = smul.u32 %s31, 2654435769
    %s33 = smul.u32 0, 2048
    %s34 = sadd.s32 %s33, %s32
    %v35 = vlaneseq
    %v36 = vshrl.u32 %v35, 7
    %v37 = vlaneseq
    %v38 = vand.u32 %v37, 127
    %v39 = vadd.s32 %v38, 128
    %v40 = vmul.u32 %v36, 256
    %v41 = vadd.s32 %v40, %v38
    %v42 = vadd.s32 %v40, %v39
    %v43 = vstv %s34
    %v44 = vadd.s32 %v41, %v43
    %v45 = vadd.s32 %v42, %v43
    %v46 = vshrl.u32 %v44, 16
    %v47 = vshrl.u32 %v45, 16
    %v48 = vxor.u32 %v44, %v46
    %v49 = vxor.u32 %v45, %v47
    %v50 = vmul.u32 %v48, 2146121005
    %v51 = vmul.u32 %v49, 2146121005
    %v52 = vshrl.u32 %v50, 15
    %v53 = vshrl.u32 %v51, 15
    %v54 = vxor.u32 %v50, %v52
    %v55 = vxor.u32 %v51, %v53
    %v56 = vmul.u32 %v54, 2221713035
    %v57 = vmul.u32 %v55, 2221713035
    %v58 = vshrl.u32 %v56, 16
    %v59 = vshrl.u32 %v57, 16
    %v60 = vxor.u32 %v56, %v58
    %v61 = vxor.u32 %v57, %v59
    %v62 = vshrl.u32 %v60, 9
    %v63 = vshrl.u32 %v61, 9
    %v64 = vcvt.s32.f32 %v62
    %v65 = vcvt.s32.f32 %v63
    %v66 = vadd.f32 %v64, 0.5
    %v67 = vadd.f32 %v65, 0.5
    %v68 = vmul.f32 %v66, 1.1920929e-07
    %v69 = vmul.f32 %v67, 1.1920929e-07
    %v70 = vmul.f32 %v68, 2.0
    %v71 = vmul.f32 %v69, 2.0
    %v72 = vsub.f32 %v70, 1.0
    %v73 = vsub.f32 %v71, 1.0
    %v74 = vsub.f32 1.0, %v72
    %v75 = vsub.f32 1.0, %v73
    %v76 = vadd.f32 %v72, 1.0
    %v77 = vadd.f32 %v73, 1.0
    %v78 = vmul.f32 %v74, %v76
    %v79 = vmul.f32 %v75, %v77
    %v80 = vlog2.pop %v78
    %v81 = vmul.f32 %v80, 0.6931472
    %v82 = vlog2.pop %v79
    %v83 = vmul.f32 %v82, 0.6931472
    %v84 = vsub.f32 0.0, %v81
    %v85 = vsub.f32 0.0, %v83
    %v86 = vsub.f32 %v84, 2.5
    %v87 = vsub.f32 %v85, 2.5
    %v88 = vmul.f32 %v86, 2.8102264e-08
    %v89 = vmul.f32 %v87, 2.8102264e-08
    %v90 = vadd.f32 %v88, 3.4327394e-07
    %v91 = vadd.f32 %v89, 3.4327394e-07
    %v92 = vmul.f32 %v90, %v86
    %v93 = vmul.f32 %v91, %v87
    %v94 = vadd.f32 %v92, -3.5233877e-06
    %v95 = vadd.f32 %v93, -3.5233877e-06
    %v96 = vmul.f32 %v94, %v86
    %v97 = vmul.f32 %v95, %v87
    %v98 = vadd.f32 %v96, -4.3915065e-06
    %v99 = vadd.f32 %v97, -4.3915065e-06
    %v100 = vmul.f32 %v98, %v86
    %v101 = vmul.f32 %v99, %v87
    %v102 = vadd.f32 %v100, 0.00021858087
    %v103 = vadd.f32 %v101, 0.00021858087
    %v104 = vmul.f32 %v102, %v86
    %v105 = vmul.f32 %v103, %v87
    %v106 = vadd.f32 %v104, -0.001253725
    %v107 = vadd.f32 %v105, -0.001253725
    %v108 = vmul.f32 %v106, %v86
    %v109 = vmul.f32 %v107, %v87
    %v110 = vadd.f32 %v108, -0.0041776816
    %v111 = vadd.f32 %v109, -0.0041776816
    %v112 = vmul.f32 %v110, %v86
    %v113 = vmul.f32 %v111, %v87
    %v114 = vadd.f32 %v112, 0.24664073
    %v115 = vadd.f32 %v113, 0.24664073
    %v116 = vmul.f32 %v114, %v86
    %v117 = vmul.f32 %v115, %v87
    %v118 = vadd.f32 %v116, 1.5014094
    %v119 = vadd.f32 %v117, 1.5014094
    %v120 = vrsqrt.pop %v84
    %v121 = vmul.f32 %v84, %v120
    %vm122 = vcmp.eq.f32.partialorder %v84, inf
    %v123 = vsel %vm122, %v84, %v121
    %vm124 = vcmp.eq.f32.partialorder %v84, 0.0
    %v125 = vand.u32 %v84, 2147483648
    %v126 = vsel %vm124, %v125, %v123
    %v127 = vrsqrt.pop %v85
    %v128 = vmul.f32 %v85, %v127
    %vm129 = vcmp.eq.f32.partialorder %v85, inf
    %v130 = vsel %vm129, %v85, %v128
    %vm131 = vcmp.eq.f32.partialorder %v85, 0.0
    %v132 = vand.u32 %v85, 2147483648
    %v133 = vsel %vm131, %v132, %v130
    %v134 = vsub.f32 %v126, 3.0
    %v135 = vsub.f32 %v133, 3.0
    %v136 = vmul.f32 %v134, -0.00020021426
    %v137 = vmul.f32 %v135, -0.00020021426
    %v138 = vadd.f32 %v136, 0.00010095056
    %v139 = vadd.f32 %v137, 0.00010095056
    %v140 = vmul.f32 %v138, %v134
    %v141 = vmul.f32 %v139, %v135
    %v142 = vadd.f32 %v140, 0.0013493432
    %v143 = vadd.f32 %v141, 0.0013493432
    %v144 = vmul.f32 %v142, %v134
    %v145 = vmul.f32 %v143, %v135
    %v146 = vadd.f32 %v144, -0.0036734284
    %v147 = vadd.f32 %v145, -0.0036734284
    %v148 = vmul.f32 %v146, %v134
    %v149 = vmul.f32 %v147, %v135
    %v150 = vadd.f32 %v148, 0.0057395077
    %v151 = vadd.f32 %v149, 0.0057395077
    %v152 = vmul.f32 %v150, %v134
    %v153 = vmul.f32 %v151, %v135
    %v154 = vadd.f32 %v152, -0.0076224613
    %v155 = vadd.f32 %v153, -0.0076224613
    %v156 = vmul.f32 %v154, %v134
    %v157 = vmul.f32 %v155, %v135
    %v158 = vadd.f32 %v156, 0.0094388705
    %v159 = vadd.f32 %v157, 0.0094388705
    %v160 = vmul.f32 %v158, %v134
    %v161 = vmul.f32 %v159, %v135
    %v162 = vadd.f32 %v160, 1.001674
    %v163 = vadd.f32 %v161, 1.001674
    %v164 = vmul.f32 %v162, %v134
    %v165 = vmul.f32 %v163, %v135
    %v166 = vadd.f32 %v164, 2.8329768
    %v167 = vadd.f32 %v165, 2.8329768
    %vm168 = vcmp.lt.f32.partialorder %v84, 5.0
    %vm169 = vcmp.lt.f32.partialorder %v85, 5.0
    %v170 = vsel %vm168, %v118, %v166
    %v171 = vsel %vm169, %v119, %v167
    %v172 = vmul.f32 %v170, %v72
    %v173 = vmul.f32 %v171, %v73
    %v174 = vmul.f32 %v172, 1.4142135
    %v175 = vmul.f32 %v173, 1.4142135
    %s176 = sld [smem:[#allocation3]]
    %v177 = vstv %s176
    %v178 = vmul.f32 %v174, %v177
    %v179 = vmul.f32 %v175, %v177
    %v180 = vadd.f32 %v29, %v178
    %v181 = vadd.f32 %v30, %v179
    %182 = vst [vmem:[#allocation7] sm:$0xff] %v180
    %183 = vst [vmem:[#allocation7 + $0x8] sm:$0xff] %v181
    // Predicated region
    $region18: #{tpu_custom_call.1} parent=1 // pred_check
      _
    $region19: #{tpu_custom_call.1} parent=1 // pred_check_branch
      %185 = sbr.rel (0) target = $region21
    $region20: #{tpu_custom_call.1} parent=1 // pred_region
      %s187 = ssub.s32 256, 256
      %188 = vsyncadd [#allocation6], %s187
      %s190 = sshll.u32 [#allocation7], 4
      %s191 = int_to_ptr.vmem [resolvable:$true] %s190
      %193 = dma.vmem_to_hbm [thread:$0]  %s191, 256, %s3, [#allocation6]
    $region21: #{tpu_custom_call.1} parent=1 // pred_fallthru
      _
    // Predicated region
    $region22: #{tpu_custom_call.1} parent=1 // pred_check
      _
    $region23: #{tpu_custom_call.1} parent=1 // pred_check_branch
      %195 = sbr.rel (0) target = $region25
    $region24: #{tpu_custom_call.1} parent=1 // pred_region
      %196 = dma.done [#allocation6], 256
    $region25: #{tpu_custom_call.1} parent=1 // pred_fallthru
      _
    %197 = vsyncpa [#allocation5], 1
    %198 = vsyncpa [#allocation6], 1

</llo_original>
